<compile_context>
chip_gen: v6e
topology: v6e:2x2x1
jax: 0.10.0
libtpu: 0.0.40
codegen_flags: <defaults>
</compile_context>

<pallas_src>
import jax
import jax.numpy as jnp
from jax.experimental import pallas as pl
from jax.experimental.pallas import tpu as pltpu

_SQRT_HALF = 0.7071067811865476  # 1/sqrt(2) for exact (erf) GELU


def _temporal_mixer_kernel(x_ref, w1t_ref, b1_ref, w2t_ref, b2_ref, o_ref):
    # x_ref: (Bb, S, dt) slab; seq on sublanes, feature columns on lanes.
    w1t = w1t_ref[...]          # (2S, S)  f32, gamma already folded in
    b1 = b1_ref[...]            # (2S, 1)  f32, W1^T @ beta already folded in
    w2t = w2t_ref[...]          # (S, 2S)  f32
    b2 = b2_ref[...]            # (S, 1)   f32

    # Short static unroll over the batch tile; every iteration is an
    # independent (S, dt) slab so the MXU N dimension stays lane-dense (>=128).
    for b in range(x_ref.shape[0]):
        x = x_ref[b].astype(jnp.float32)                       # (S, dt)

        # LayerNorm over the seq axis (axis 0), eps = 1e-5 (PyTorch default).
        # One-pass statistics: var = E[x^2] - mean^2 (fine for normalized
        # activation scales; saves a full subtract+square pass + reduction).
        mean = jnp.mean(x, axis=0, keepdims=True)
        ex2 = jnp.mean(x * x, axis=0, keepdims=True)
        var = ex2 - mean * mean
        xn = (x - mean) * jax.lax.rsqrt(var + 1e-5)

        # Linear(S -> 2S) along seq (gamma/beta folded into w1t/b1):
        #   h^T = (W1^T diag(gamma)) @ xn + (b1 + W1^T beta)   -> (2S, dt)
        h = jnp.dot(w1t, xn, preferred_element_type=jnp.float32) + b1
        # Exact GELU (erf form, PyTorch nn.GELU default).
        h = 0.5 * h * (1.0 + jax.lax.erf(h * _SQRT_HALF))

        # TODO(synk): nn.Dropout(0.1) is identity in eval mode; training-mode
        # RNG dropout is not implemented here.

        # Linear(2S -> S): y^T = W2^T @ h^T + b2               -> (S, dt)
        y = jnp.dot(w2t, h, preferred_element_type=jnp.float32) + b2
        o_ref[b] = y.astype(o_ref.dtype)


def _pick_tiles(B, S, D, target_block_bytes):
    """Choose (Bb, dt): contiguous, ~target-sized blocks, >=2 grid steps."""
    slab_bytes = S * D * 4
    # Prefer dt = D (one fully contiguous S*D*4-byte DMA per batch element).
    # Only tile D when a single-batch slab is already much larger than the
    # target and D is 128-divisible (so the tile stays a legal lane block).
    if slab_bytes > 2 * target_block_bytes and D % 128 == 0:
        dt = 128
        t = 128
        while t <= D:
            if D % t == 0 and S * t * 4 <= 2 * target_block_bytes:
                dt = t
            t += 128
    else:
        dt = D
    d_steps = D // dt

    # Fold batch into the block: largest divisor of B that keeps the block at
    # or under the byte target while leaving >= 2 grid steps (v7x megacore /
    # double-buffering).
    Bb = 1
    for cand in range(B, 0, -1):
        if B % cand != 0:
            continue
        if cand * S * dt * 4 <= target_block_bytes and (B // cand) * d_steps >= 2:
            Bb = cand
            break
    return Bb, dt


def temporal_mixer(x, gamma, beta, w1, b1, w2, b2, *,
                   target_block_bytes=2 * 2**20):
    """x: [B, S, D] f32; gamma/beta: [S]; w1: [S, 2S]; b1: [2S]; w2: [2S, S]; b2: [S]."""
    B, S, D = x.shape
    S2 = w1.shape[1]
    Bb, dt = _pick_tiles(B, S, D, target_block_bytes)
    grid = (B // Bb, D // dt)

    # Tiny constants, oriented for the transpose-free kernel layout.  The
    # LayerNorm affine is folded into the first linear layer:
    #   W1^T @ (xn*gamma + beta) + b1 == (W1^T diag(gamma)) @ xn + (b1 + W1^T beta)
    gamma_f = gamma.astype(jnp.float32)
    beta_f = beta.astype(jnp.float32)
    w1t = (w1.T.astype(jnp.float32) * gamma_f[None, :])          # (2S, S)
    b1c = (b1.astype(jnp.float32)
           + w1.T.astype(jnp.float32) @ beta_f).reshape(S2, 1)   # (2S, 1)
    w2t = w2.T.astype(jnp.float32)                               # (S, 2S)
    b2c = b2.astype(jnp.float32).reshape(S, 1)                   # (S, 1)

    const = lambda i, j: (0, 0)
    xmap = lambda i, j: (i, 0, j)

    # VMEM budget: double-buffered (Bb, S, dt) in/out blocks, resident tiny
    # weights, plus f32 intermediates of the unrolled batch loop.  The limit is
    # generation-aware: never request the full 64 MiB of a v7x TensorCore.
    block_bytes = Bb * S * dt * 4
    weight_bytes = (w1t.size + w2t.size + b1c.size + b2c.size) * 4
    est = 4 * block_bytes + 2 * weight_bytes + 4 * Bb * S2 * dt * 4
    try:
        vmem_cap = int(pltpu.get_tpu_info().vmem_capacity_bytes)
    except Exception:
        vmem_cap = 64 * 2**20
    vmem_limit = int(min(int(0.75 * vmem_cap), max(32 * 2**20, 2 * est)))

    cost = pl.CostEstimate(
        flops=2 * B * D * (S * S2 + S2 * S),
        transcendentals=B * D * S2,
        bytes_accessed=2 * x.size * 4 + weight_bytes)

    return pl.pallas_call(
        _temporal_mixer_kernel,
        out_shape=jax.ShapeDtypeStruct((B, S, D), x.dtype),
        grid_spec=pltpu.PrefetchScalarGridSpec(
            num_scalar_prefetch=0,
            grid=grid,
            in_specs=[
                pl.BlockSpec((Bb, S, dt), xmap),    # x slab, no transpose
                pl.BlockSpec((S2, S), const),       # W1^T (gamma folded)
                pl.BlockSpec((S2, 1), const),       # b1 (beta folded)
                pl.BlockSpec((S, S2), const),       # W2^T
                pl.BlockSpec((S, 1), const),        # b2
            ],
            out_specs=pl.BlockSpec((Bb, S, dt), xmap),
        ),
        compiler_params=pltpu.CompilerParams(
            dimension_semantics=("parallel", "parallel"),
            vmem_limit_bytes=vmem_limit),
        cost_estimate=cost,
    )(x, w1t, b1c, w2t, b2c)


def _reference(x, gamma, beta, w1, b1, w2, b2):
    """Pure-f32 JAX reference mirroring the PyTorch module (eval mode)."""
    x_t = jnp.transpose(x, (0, 2, 1)).astype(jnp.float32)       # [B, D, S]
    mean = jnp.mean(x_t, axis=-1, keepdims=True)
    var = jnp.mean((x_t - mean) ** 2, axis=-1, keepdims=True)
    xn = (x_t - mean) / jnp.sqrt(var + 1e-5) * gamma + beta
    h = xn @ w1 + b1
    h = 0.5 * h * (1.0 + jax.lax.erf(h / jnp.sqrt(2.0)))
    y = h @ w2 + b2
    return jnp.transpose(y, (0, 2, 1))                           # [B, S, D]


if __name__ == "__main__":
    # seq_len = 24 as in the module; D a multiple of 128 and B > Bb so the
    # lane-dense (Bb, S, D) batch-folded tiling (and the in-kernel batch loop)
    # is actually exercised while shapes stay small.
    B, S, D = 4, 24, 256
    key = jax.random.PRNGKey(0)
    kx, k1, k2, k3, k4, k5, k6 = jax.random.split(key, 7)

    x = jax.random.normal(kx, (B, S, D), dtype=jnp.float32)

    # Parameters (shapes from nn.LayerNorm(S), nn.Linear(S,2S), nn.Linear(2S,S));
    # gamma/beta made non-trivial so the folded LN-affine path is tested.
    gamma = jax.random.uniform(k5, (S,), jnp.float32, 0.5, 1.5)
    beta = jax.random.normal(k6, (S,), jnp.float32) * 0.1
    lim1 = 1.0 / float(S) ** 0.5
    lim2 = 1.0 / float(2 * S) ** 0.5
    w1 = jax.random.uniform(k1, (S, 2 * S), jnp.float32, -lim1, lim1)
    b1 = jax.random.uniform(k2, (2 * S,), jnp.float32, -lim1, lim1)
    w2 = jax.random.uniform(k3, (2 * S, S), jnp.float32, -lim2, lim2)
    b2 = jax.random.uniform(k4, (S,), jnp.float32, -lim2, lim2)

    out = temporal_mixer(x, gamma, beta, w1, b1, w2, b2)
    out = jax.block_until_ready(out)

    ref = _reference(x, gamma, beta, w1, b1, w2, b2)
    assert out.shape == (B, S, D)
    # f32 matmuls throughout (per perf review: bf16 bought no speed on this
    # HBM-bound kernel) => tight tolerance vs the pure-f32 reference.
    err = float(jnp.max(jnp.abs(out - ref)))
    assert err < 1e-3, f"mismatch vs reference: max abs err = {err}"
    print("KERNEL_OK")
</pallas_src>

<mosaic_0001>
module attributes {stable_mosaic.version = 11 : i64} {
  func.func @_temporal_mixer_kernel(%arg0: i32, %arg1: i32, %arg2: memref<2x24x256xf32, #tpu.memory_space<vmem>>, %arg3: memref<48x24xf32, #tpu.memory_space<vmem>>, %arg4: memref<48x1xf32, #tpu.memory_space<vmem>>, %arg5: memref<24x48xf32, #tpu.memory_space<vmem>>, %arg6: memref<24x1xf32, #tpu.memory_space<vmem>>, %arg7: memref<2x24x256xf32, #tpu.memory_space<vmem>>) attributes {dimension_semantics = [#tpu.dimension_semantics<parallel>, #tpu.dimension_semantics<parallel>], iteration_bounds = array<i64: 2, 1>, scalar_prefetch = 0 : i64, scratch_operands = 0 : i64, tpu.core_type = #tpu.core_type<tc>, window_params = [{transform_indices = @transform_0, window_bounds = array<i64: 2, 24, 256>}, {pipeline_mode = #tpu.pipeline_mode<synchronous>, transform_indices = @transform_1, window_bounds = array<i64: 48, 24>}, {pipeline_mode = #tpu.pipeline_mode<synchronous>, transform_indices = @transform_2, window_bounds = array<i64: 48, 1>}, {pipeline_mode = #tpu.pipeline_mode<synchronous>, transform_indices = @transform_3, window_bounds = array<i64: 24, 48>}, {pipeline_mode = #tpu.pipeline_mode<synchronous>, transform_indices = @transform_4, window_bounds = array<i64: 24, 1>}, {transform_indices = @transform_5, window_bounds = array<i64: 2, 24, 256>}]} {
    %c0 = arith.constant 0 : index
    %c0_0 = arith.constant 0 : index
    %0 = vector.load %arg3[%c0, %c0_0] : memref<48x24xf32, #tpu.memory_space<vmem>>, vector<48x24xf32>
    %c0_1 = arith.constant 0 : index
    %c0_2 = arith.constant 0 : index
    %1 = vector.load %arg4[%c0_1, %c0_2] : memref<48x1xf32, #tpu.memory_space<vmem>>, vector<48x1xf32>
    %c0_3 = arith.constant 0 : index
    %c0_4 = arith.constant 0 : index
    %2 = vector.load %arg5[%c0_3, %c0_4] : memref<24x48xf32, #tpu.memory_space<vmem>>, vector<24x48xf32>
    %c0_5 = arith.constant 0 : index
    %c0_6 = arith.constant 0 : index
    %3 = vector.load %arg6[%c0_5, %c0_6] : memref<24x1xf32, #tpu.memory_space<vmem>>, vector<24x1xf32>
    %c0_7 = arith.constant 0 : index
    %c0_8 = arith.constant 0 : index
    %c0_9 = arith.constant 0 : index
    %4 = vector.load %arg2[%c0_7, %c0_8, %c0_9] : memref<2x24x256xf32, #tpu.memory_space<vmem>>, vector<1x24x256xf32>
    %5 = vector.shape_cast %4 : vector<1x24x256xf32> to vector<24x256xf32>
    %cst = arith.constant dense<0.000000e+00> : vector<256xf32>
    %6 = vector.multi_reduction <add>, %5, %cst [0] : vector<24x256xf32> to vector<256xf32>
    %7 = vector.shape_cast %6 : vector<256xf32> to vector<1x256xf32>
    %cst_10 = arith.constant 2.400000e+01 : f32
    %8 = vector.broadcast %cst_10 : f32 to vector<1x256xf32>
    %9 = arith.divf %7, %8 : vector<1x256xf32>
    %10 = arith.mulf %5, %5 : vector<24x256xf32>
    %cst_11 = arith.constant dense<0.000000e+00> : vector<256xf32>
    %11 = vector.multi_reduction <add>, %10, %cst_11 [0] : vector<24x256xf32> to vector<256xf32>
    %12 = vector.shape_cast %11 : vector<256xf32> to vector<1x256xf32>
    %cst_12 = arith.constant 2.400000e+01 : f32
    %13 = vector.broadcast %cst_12 : f32 to vector<1x256xf32>
    %14 = arith.divf %12, %13 : vector<1x256xf32>
    %15 = arith.mulf %9, %9 : vector<1x256xf32>
    %16 = arith.subf %14, %15 : vector<1x256xf32>
    %17 = vector.broadcast %9 : vector<1x256xf32> to vector<24x256xf32>
    %18 = arith.subf %5, %17 : vector<24x256xf32>
    %cst_13 = arith.constant 9.99999974E-6 : f32
    %19 = vector.broadcast %cst_13 : f32 to vector<1x256xf32>
    %20 = arith.addf %16, %19 : vector<1x256xf32>
    %21 = math.rsqrt %20 : vector<1x256xf32>
    %22 = vector.broadcast %21 : vector<1x256xf32> to vector<24x256xf32>
    %23 = arith.mulf %18, %22 : vector<24x256xf32>
    %cst_14 = arith.constant dense<0.000000e+00> : vector<48x256xf32>
    %24 = tpu.matmul %0, %23, %cst_14 {dimension_numbers = #tpu.dot_dimension_numbers<[1], [0], [0], [1], [0, 0, 1, 1], [], []>} : vector<48x24xf32>, vector<24x256xf32>, vector<48x256xf32> -> vector<48x256xf32>
    %25 = vector.broadcast %1 : vector<48x1xf32> to vector<48x256xf32>
    %26 = arith.addf %24, %25 : vector<48x256xf32>
    %cst_15 = arith.constant 5.000000e-01 : f32
    %27 = vector.broadcast %cst_15 : f32 to vector<48x256xf32>
    %28 = arith.mulf %27, %26 : vector<48x256xf32>
    %cst_16 = arith.constant 0.707106769 : f32
    %29 = vector.broadcast %cst_16 : f32 to vector<48x256xf32>
    %30 = arith.mulf %26, %29 : vector<48x256xf32>
    %31 = math.erf %30 : vector<48x256xf32>
    %cst_17 = arith.constant 1.000000e+00 : f32
    %32 = vector.broadcast %cst_17 : f32 to vector<48x256xf32>
    %33 = arith.addf %32, %31 : vector<48x256xf32>
    %34 = arith.mulf %28, %33 : vector<48x256xf32>
    %cst_18 = arith.constant dense<0.000000e+00> : vector<24x256xf32>
    %35 = tpu.matmul %2, %34, %cst_18 {dimension_numbers = #tpu.dot_dimension_numbers<[1], [0], [0], [1], [0, 0, 1, 1], [], []>} : vector<24x48xf32>, vector<48x256xf32>, vector<24x256xf32> -> vector<24x256xf32>
    %36 = vector.broadcast %3 : vector<24x1xf32> to vector<24x256xf32>
    %37 = arith.addf %35, %36 : vector<24x256xf32>
    %c0_19 = arith.constant 0 : index
    %c0_20 = arith.constant 0 : index
    %c0_21 = arith.constant 0 : index
    %38 = vector.load %arg7[%c0_19, %c0_20, %c0_21] : memref<2x24x256xf32, #tpu.memory_space<vmem>>, vector<1x24x256xf32>
    %39 = vector.shape_cast %38 : vector<1x24x256xf32> to vector<24x256xf32>
    %40 = vector.shape_cast %37 : vector<24x256xf32> to vector<1x24x256xf32>
    tpu.vector_store %arg7[%c0_19, %c0_20, %c0_21], %40 {strides = array<i32>} : memref<2x24x256xf32, #tpu.memory_space<vmem>>, vector<1x24x256xf32>,
    %c1 = arith.constant 1 : index
    %c0_22 = arith.constant 0 : index
    %c0_23 = arith.constant 0 : index
    %41 = vector.load %arg2[%c1, %c0_22, %c0_23] : memref<2x24x256xf32, #tpu.memory_space<vmem>>, vector<1x24x256xf32>
    %42 = vector.shape_cast %41 : vector<1x24x256xf32> to vector<24x256xf32>
    %cst_24 = arith.constant dense<0.000000e+00> : vector<256xf32>
    %43 = vector.multi_reduction <add>, %42, %cst_24 [0] : vector<24x256xf32> to vector<256xf32>
    %44 = vector.shape_cast %43 : vector<256xf32> to vector<1x256xf32>
    %cst_25 = arith.constant 2.400000e+01 : f32
    %45 = vector.broadcast %cst_25 : f32 to vector<1x256xf32>
    %46 = arith.divf %44, %45 : vector<1x256xf32>
    %47 = arith.mulf %42, %42 : vector<24x256xf32>
    %cst_26 = arith.constant dense<0.000000e+00> : vector<256xf32>
    %48 = vector.multi_reduction <add>, %47, %cst_26 [0] : vector<24x256xf32> to vector<256xf32>
    %49 = vector.shape_cast %48 : vector<256xf32> to vector<1x256xf32>
    %cst_27 = arith.constant 2.400000e+01 : f32
    %50 = vector.broadcast %cst_27 : f32 to vector<1x256xf32>
    %51 = arith.divf %49, %50 : vector<1x256xf32>
    %52 = arith.mulf %46, %46 : vector<1x256xf32>
    %53 = arith.subf %51, %52 : vector<1x256xf32>
    %54 = vector.broadcast %46 : vector<1x256xf32> to vector<24x256xf32>
    %55 = arith.subf %42, %54 : vector<24x256xf32>
    %cst_28 = arith.constant 9.99999974E-6 : f32
    %56 = vector.broadcast %cst_28 : f32 to vector<1x256xf32>
    %57 = arith.addf %53, %56 : vector<1x256xf32>
    %58 = math.rsqrt %57 : vector<1x256xf32>
    %59 = vector.broadcast %58 : vector<1x256xf32> to vector<24x256xf32>
    %60 = arith.mulf %55, %59 : vector<24x256xf32>
    %cst_29 = arith.constant dense<0.000000e+00> : vector<48x256xf32>
    %61 = tpu.matmul %0, %60, %cst_29 {dimension_numbers = #tpu.dot_dimension_numbers<[1], [0], [0], [1], [0, 0, 1, 1], [], []>} : vector<48x24xf32>, vector<24x256xf32>, vector<48x256xf32> -> vector<48x256xf32>
    %62 = vector.broadcast %1 : vector<48x1xf32> to vector<48x256xf32>
    %63 = arith.addf %61, %62 : vector<48x256xf32>
    %cst_30 = arith.constant 5.000000e-01 : f32
    %64 = vector.broadcast %cst_30 : f32 to vector<48x256xf32>
    %65 = arith.mulf %64, %63 : vector<48x256xf32>
    %cst_31 = arith.constant 0.707106769 : f32
    %66 = vector.broadcast %cst_31 : f32 to vector<48x256xf32>
    %67 = arith.mulf %63, %66 : vector<48x256xf32>
    %68 = math.erf %67 : vector<48x256xf32>
    %cst_32 = arith.constant 1.000000e+00 : f32
    %69 = vector.broadcast %cst_32 : f32 to vector<48x256xf32>
    %70 = arith.addf %69, %68 : vector<48x256xf32>
    %71 = arith.mulf %65, %70 : vector<48x256xf32>
    %cst_33 = arith.constant dense<0.000000e+00> : vector<24x256xf32>
    %72 = tpu.matmul %2, %71, %cst_33 {dimension_numbers = #tpu.dot_dimension_numbers<[1], [0], [0], [1], [0, 0, 1, 1], [], []>} : vector<24x48xf32>, vector<48x256xf32>, vector<24x256xf32> -> vector<24x256xf32>
    %73 = vector.broadcast %3 : vector<24x1xf32> to vector<24x256xf32>
    %74 = arith.addf %72, %73 : vector<24x256xf32>
    %c1_34 = arith.constant 1 : index
    %c0_35 = arith.constant 0 : index
    %c0_36 = arith.constant 0 : index
    %75 = vector.load %arg7[%c1_34, %c0_35, %c0_36] : memref<2x24x256xf32, #tpu.memory_space<vmem>>, vector<1x24x256xf32>
    %76 = vector.shape_cast %75 : vector<1x24x256xf32> to vector<24x256xf32>
    %77 = vector.shape_cast %74 : vector<24x256xf32> to vector<1x24x256xf32>
    tpu.vector_store %arg7[%c1_34, %c0_35, %c0_36], %77 {strides = array<i32>} : memref<2x24x256xf32, #tpu.memory_space<vmem>>, vector<1x24x256xf32>,
    return
  }
  func.func @transform_0(%arg0: i32, %arg1: i32) -> (i32, i32, i32) {
    %c0_i32 = arith.constant 0 : i32
    %c0_i32_0 = arith.constant 0 : i32
    return %arg0, %c0_i32, %arg1 : i32, i32, i32
  }
  func.func @transform_1(%arg0: i32, %arg1: i32) -> (i32, i32) {
    %c0_i32 = arith.constant 0 : i32
    %c0_i32_0 = arith.constant 0 : i32
    %c0_i32_1 = arith.constant 0 : i32
    return %c0_i32, %c0_i32_0 : i32, i32
  }
  func.func @transform_2(%arg0: i32, %arg1: i32) -> (i32, i32) {
    %c0_i32 = arith.constant 0 : i32
    %c0_i32_0 = arith.constant 0 : i32
    %c0_i32_1 = arith.constant 0 : i32
    return %c0_i32, %c0_i32_0 : i32, i32
  }
  func.func @transform_3(%arg0: i32, %arg1: i32) -> (i32, i32) {
    %c0_i32 = arith.constant 0 : i32
    %c0_i32_0 = arith.constant 0 : i32
    %c0_i32_1 = arith.constant 0 : i32
    return %c0_i32, %c0_i32_0 : i32, i32
  }
  func.func @transform_4(%arg0: i32, %arg1: i32) -> (i32, i32) {
    %c0_i32 = arith.constant 0 : i32
    %c0_i32_0 = arith.constant 0 : i32
    %c0_i32_1 = arith.constant 0 : i32
    return %c0_i32, %c0_i32_0 : i32, i32
  }
  func.func @transform_5(%arg0: i32, %arg1: i32) -> (i32, i32, i32) {
    %c0_i32 = arith.constant 0 : i32
    %c0_i32_0 = arith.constant 0 : i32
    return %arg0, %c0_i32, %arg1 : i32, i32, i32
  }
}

</mosaic_0001>

<llo_original>
// kernel: tpu_custom_call.1
$region0: #{tpu_custom_call.1}
  #allocation0 [shape = 'u32[]', space=smem, size = 0x4, offset = 0x4, fixed_abs, tag = 'smem constant byte address 0x4 - core index']
  #allocation1 [shape = 'u32[144,128]{1,0:T(1,128)}', space=vmem, size = 0x12000, scoped, tag = 'internal scratch']
  %s0 = inlined_call_operand.hbm [shape: f32[4,24,256], index: 0, kind: input, shape index: {}]
  %s1 = inlined_call_operand.vmem [shape: f32[48,24], index: 1, kind: input, shape index: {}]
  %s2 = inlined_call_operand.vmem [shape: f32[48,1], index: 2, kind: input, shape index: {}]
  %s3 = inlined_call_operand.vmem [shape: f32[24,48], index: 3, kind: input, shape index: {}]
  %s4 = inlined_call_operand.vmem [shape: f32[24,1], index: 4, kind: input, shape index: {}]
  %s5 = inlined_call_operand.hbm [shape: f32[4,24,256], index: 5, kind: output, shape index: {}]
  %s6 = sld [smem:[#allocation0]]
  $region57: #{tpu_custom_call.1} parent=0
    _
  %s8 = ssub.s32 1, %s6
  %s9 = scalar_select 0, %s8, %s6
  $region1: #{tpu_custom_call.1} parent=0
    #allocation2 [shape = 'u8[98304]{0}', space=vmem, size = 0x18000, scoped, tag = 'input window, operand 0']
    #allocation3 [shape = 's32[2]{0}', space=sflag, size = 0x8, scoped, tag = 'scoped memory for tpu_custom_call.1']
    #allocation4 [shape = 's32[2]{0}', space=sflag, size = 0x8, scoped, tag = 'scoped memory for tpu_custom_call.1']
    #allocation5 [shape = 'u8[98304]{0}', space=vmem, size = 0x18000, scoped, tag = 'output window, operand 0']
    %10 = vsyncpa [#allocation3], 0
    %s11 = scalar_lea.sflag [#allocation3], 1
    %12 = vsyncpa %s11, 0
    %13 = vsyncpa [#allocation4], 0
    %s14 = scalar_lea.sflag [#allocation4], 1
    %15 = vsyncpa %s14, 0
    loop: start=0, step=1, limit=4
    $region2: #{tpu_custom_call.1} parent=1 // loop_pre_header
      _
    $region3: #{tpu_custom_call.1} parent=1 // loop_header
      %s17 = sphi 0, %s21
      %p18 = scmp.ge.s32.totalorder %s17, 4
      %s24 = sphi 0, %s36
      %s25 = sphi 0, %s32
      %s26 = sphi 0, %s24
      %s27 = sphi 0, %s25
      %s28 = sphi 0, %s26
      %s29 = sphi 0, %s27
      %s41 = sphi 0, %s43
      %s44 = sphi 0, %s41
      %s45 = sphi 0, %s44
      %s61 = sphi 0, %s45
      %s65 = sphi 0, %s65
      %s67 = sphi 0, %s65
      %s68 = sphi 0, %s67
      %s82 = sphi 0, %s68
      %s86 = sphi 0, %s86
      %s88 = sphi 0, %s86
      %s89 = sphi 0, %s88
      %s103 = sphi 0, %s89
      %s107 = sphi 0, %s107
      %s109 = sphi 0, %s107
      %s110 = sphi 0, %s109
      %s124 = sphi 0, %s110
      %s128 = sphi 0, %s128
      %s130 = sphi 0, %s128
      %s131 = sphi 0, %s130
      %s145 = sphi 0, %s131
      %s153 = sphi 0, %s155
      %s156 = sphi 0, %s153
      %s157 = sphi 0, %s156
      %s173 = sphi 0, %s157
    $region4: #{tpu_custom_call.1} parent=1 // loop_header_branch
      %20 = sbr.rel (%p18) target = $region8
    $region5: #{tpu_custom_call.1} parent=1 // loop_body
      %s22 = ssub.s32 %s17, 1
      %s23 = ssub.s32 %s17, 2
      %s30 = sadd.s32 1, %s25
      %p31 = scmp.ge.s32.totalorder %s30, 1
      %s32 = scalar_select %p31, 0, %s30
      %s33 = sadd.s32 1, %s24
      %s34 = scalar_select %p31, %s33, %s24
      %p35 = scmp.ge.s32.totalorder %s34, 2
      %s36 = scalar_select %p35, 0, %s34
      %s37 = ssub.s32 %s24, %s36
      %s38 = ssub.s32 %s25, %s32
      %s39 = sor.u32 %s37, %s38
      %p40 = scmp.eq.s32.totalorder %s39, 0
      %s42 = sadd.s32 %s41, 1
      %s43 = scalar_select %p40, %s41, %s42
      %p46 = pneg %p40
      %p47 = scmp.eq.s32.totalorder %s17, 1
      %p48 = por %p46, %p47
      %p49 = scmp.ne.s32.totalorder %s41, %s44
      %p50 = scmp.eq.s32.totalorder %s17, 0
      %p51 = por %p49, %p50
      %p52 = scmp.ne.s32.totalorder %s41, %s44
      %p53 = scmp.eq.s32.totalorder %s22, 1
      %p54 = por %p52, %p53
      %p55 = scmp.ne.s32.totalorder %s44, %s45
      %p56 = scmp.eq.s32.totalorder %s22, 0
      %p57 = por %p55, %p56
      %p58 = scmp.ne.s32.totalorder %s44, %s45
      %p59 = scmp.eq.s32.totalorder %s23, 1
      %p60 = por %p58, %p59
      %p62 = scmp.ne.s32.totalorder %s45, %s61
      %p63 = scmp.eq.s32.totalorder %s23, 0
      %p64 = por %p62, %p63
      %s66 = sadd.s32 %s65, 1
      %p69 = scmp.eq.s32.totalorder %s17, 1
      %p70 = scmp.ne.s32.totalorder %s65, %s67
      %p71 = scmp.eq.s32.totalorder %s17, 0
      %p72 = por %p70, %p71
      %p73 = scmp.ne.s32.totalorder %s65, %s67
      %p74 = scmp.eq.s32.totalorder %s22, 1
      %p75 = por %p73, %p74
      %p76 = scmp.ne.s32.totalorder %s67, %s68
      %p77 = scmp.eq.s32.totalorder %s22, 0
      %p78 = por %p76, %p77
      %p79 = scmp.ne.s32.totalorder %s67, %s68
      %p80 = scmp.eq.s32.totalorder %s23, 1
      %p81 = por %p79, %p80
      %p83 = scmp.ne.s32.totalorder %s68, %s82
      %p84 = scmp.eq.s32.totalorder %s23, 0
      %p85 = por %p83, %p84
      %s87 = sadd.s32 %s86, 1
      %p90 = scmp.eq.s32.totalorder %s17, 1
      %p91 = scmp.ne.s32.totalorder %s86, %s88
      %p92 = scmp.eq.s32.totalorder %s17, 0
      %p93 = por %p91, %p92
      %p94 = scmp.ne.s32.totalorder %s86, %s88
      %p95 = scmp.eq.s32.totalorder %s22, 1
      %p96 = por %p94, %p95
      %p97 = scmp.ne.s32.totalorder %s88, %s89
      %p98 = scmp.eq.s32.totalorder %s22, 0
      %p99 = por %p97, %p98
      %p100 = scmp.ne.s32.totalorder %s88, %s89
      %p101 = scmp.eq.s32.totalorder %s23, 1
      %p102 = por %p100, %p101
      %p104 = scmp.ne.s32.totalorder %s89, %s103
      %p105 = scmp.eq.s32.totalorder %s23, 0
      %p106 = por %p104, %p105
      %s108 = sadd.s32 %s107, 1
      %p111 = scmp.eq.s32.totalorder %s17, 1
      %p112 = scmp.ne.s32.totalorder %s107, %s109
      %p113 = scmp.eq.s32.totalorder %s17, 0
      %p114 = por %p112, %p113
      %p115 = scmp.ne.s32.totalorder %s107, %s109
      %p116 = scmp.eq.s32.totalorder %s22, 1
      %p117 = por %p115, %p116
      %p118 = scmp.ne.s32.totalorder %s109, %s110
      %p119 = scmp.eq.s32.totalorder %s22, 0
      %p120 = por %p118, %p119
      %p121 = scmp.ne.s32.totalorder %s109, %s110
      %p122 = scmp.eq.s32.totalorder %s23, 1
      %p123 = por %p121, %p122
      %p125 = scmp.ne.s32.totalorder %s110, %s124
      %p126 = scmp.eq.s32.totalorder %s23, 0
      %p127 = por %p125, %p126
      %s129 = sadd.s32 %s128, 1
      %p132 = scmp.eq.s32.totalorder %s17, 1
      %p133 = scmp.ne.s32.totalorder %s128, %s130
      %p134 = scmp.eq.s32.totalorder %s17, 0
      %p135 = por %p133, %p134
      %p136 = scmp.ne.s32.totalorder %s128, %s130
      %p137 = scmp.eq.s32.totalorder %s22, 1
      %p138 = por %p136, %p137
      %p139 = scmp.ne.s32.totalorder %s130, %s131
      %p140 = scmp.eq.s32.totalorder %s22, 0
      %p141 = por %p139, %p140
      %p142 = scmp.ne.s32.totalorder %s130, %s131
      %p143 = scmp.eq.s32.totalorder %s23, 1
      %p144 = por %p142, %p143
      %p146 = scmp.ne.s32.totalorder %s131, %s145
      %p147 = scmp.eq.s32.totalorder %s23, 0
      %p148 = por %p146, %p147
      %s149 = ssub.s32 %s24, %s36
      %s150 = ssub.s32 %s25, %s32
      %s151 = sor.u32 %s149, %s150
      %p152 = scmp.eq.s32.totalorder %s151, 0
      %s154 = sadd.s32 %s153, 1
      %s155 = scalar_select %p152, %s153, %s154
      %p158 = pneg %p152
      %p159 = scmp.eq.s32.totalorder %s17, 1
      %p160 = por %p158, %p159
      %p161 = scmp.ne.s32.totalorder %s153, %s156
      %p162 = scmp.eq.s32.totalorder %s17, 0
      %p163 = por %p161, %p162
      %p164 = scmp.ne.s32.totalorder %s153, %s156
      %p165 = scmp.eq.s32.totalorder %s22, 1
      %p166 = por %p164, %p165
      %p167 = scmp.ne.s32.totalorder %s156, %s157
      %p168 = scmp.eq.s32.totalorder %s22, 0
      %p169 = por %p167, %p168
      %p170 = scmp.ne.s32.totalorder %s156, %s157
      %p171 = scmp.eq.s32.totalorder %s23, 1
      %p172 = por %p170, %p171
      %p174 = scmp.ne.s32.totalorder %s157, %s173
      %p175 = scmp.eq.s32.totalorder %s23, 0
      %p176 = por %p174, %p175
      %p177 = scmp.le.s32.totalorder 1, %s17
      %p178 = scmp.lt.s32.totalorder %s17, 3
      %p179 = pnand %p177, %p178
      %p180 = pneg %p179
      // Predicated region
      $region9: #{tpu_custom_call.1} parent=5 // pred_check
        _
      $region10: #{tpu_custom_call.1} parent=5 // pred_check_branch
        %182 = sbr.rel (%p179) target = $region12
      $region11: #{tpu_custom_call.1} parent=5 // pred_region
        %s183 = ssub.s32 %s17, 1
        // Predicated region
        $region13: #{tpu_custom_call.1} parent=11 // pred_check
          %p184 = pneg %p78
        $region14: #{tpu_custom_call.1} parent=11 // pred_check_branch
          %186 = sbr.rel (%p184) target = $region16
        $region15: #{tpu_custom_call.1} parent=11 // pred_region
          _
        $region16: #{tpu_custom_call.1} parent=11 // pred_fallthru
          _
        // Predicated region
        $region17: #{tpu_custom_call.1} parent=11 // pred_check
          %p187 = pneg %p99
        $region18: #{tpu_custom_call.1} parent=11 // pred_check_branch
          %189 = sbr.rel (%p187) target = $region20
        $region19: #{tpu_custom_call.1} parent=11 // pred_region
          _
        $region20: #{tpu_custom_call.1} parent=11 // pred_fallthru
          _
        // Predicated region
        $region21: #{tpu_custom_call.1} parent=11 // pred_check
          %p190 = pneg %p120
        $region22: #{tpu_custom_call.1} parent=11 // pred_check_branch
          %192 = sbr.rel (%p190) target = $region24
        $region23: #{tpu_custom_call.1} parent=11 // pred_region
          _
        $region24: #{tpu_custom_call.1} parent=11 // pred_fallthru
          _
        // Predicated region
        $region25: #{tpu_custom_call.1} parent=11 // pred_check
          %p193 = pneg %p141
        $region26: #{tpu_custom_call.1} parent=11 // pred_check_branch
          %195 = sbr.rel (%p193) target = $region28
        $region27: #{tpu_custom_call.1} parent=11 // pred_region
          _
        $region28: #{tpu_custom_call.1} parent=11 // pred_fallthru
          _
      $region12: #{tpu_custom_call.1} parent=5 // pred_fallthru
        _
      %p196 = scmp.lt.s32.totalorder %s17, 2
      // Predicated region
      $region29: #{tpu_custom_call.1} parent=5 // pred_check
        %p197 = pneg %p196
      $region30: #{tpu_custom_call.1} parent=5 // pred_check_branch
        %199 = sbr.rel (%p197) target = $region32
      $region31: #{tpu_custom_call.1} parent=5 // pred_region
        // Predicated region
        $region33: #{tpu_custom_call.1} parent=31 // pred_check
          %p200 = pneg %p51
        $region34: #{tpu_custom_call.1} parent=31 // pred_check_branch
          %202 = sbr.rel (%p200) target = $region36
        $region35: #{tpu_custom_call.1} parent=31 // pred_region
          %s203 = sand.u32 %s41, 1
          %s204 = scalar_lea.sflag [#allocation3], %s203
          %s205 = sand.u32 %s41, 1
          %s206 = smul.addr %s205, 96
          %s207 = scalar_lea.vmem [#allocation2], %s206
          %s208 = smul.u32 2, %s24
          %s209 = smul.u32 2, %s25
          %s211 = ssub.s32 1536, 1536
          %212 = vsyncadd %s204, %s211
          %s213 = smul.addr %s208, 6
          %s214 = sadd.s32 %s209, %s213
          %s215 = smul.addr %s214, 128
          %s216 = scalar_lea.hbm %s0, %s215
          %s217 = sshll.u32 %s207, 4
          %s218 = int_to_ptr.vmem [resolvable:$true] %s217
          %223 = dma.hbm_to_vmem [thread:$0]  %s216, 1536, %s218, %s204, 256, 256, 16
        $region36: #{tpu_custom_call.1} parent=31 // pred_fallthru
          _
      $region32: #{tpu_custom_call.1} parent=5 // pred_fallthru
        _
      %p224 = scmp.le.s32.totalorder 1, %s17
      %p225 = scmp.lt.s32.totalorder %s17, 3
      %p226 = pnand %p224, %p225
      %p227 = pneg %p226
      // Predicated region
      $region37: #{tpu_custom_call.1} parent=5 // pred_check
        _
      $region38: #{tpu_custom_call.1} parent=5 // pred_check_branch
        %229 = sbr.rel (%p226) target = $region40
      $region39: #{tpu_custom_call.1} parent=5 // pred_region
        %s230 = ssub.s32 %s17, 1
        %s231 = sand.u32 %s44, 1
        %s232 = scalar_lea.sflag [#allocation3], %s231
        %s233 = sand.u32 %s44, 1
        %s234 = smul.addr %s233, 96
        %s235 = scalar_lea.vmem [#allocation2], %s234
        // Predicated region
        $region41: #{tpu_custom_call.1} parent=39 // pred_check
          %p236 = pneg %p57
        $region42: #{tpu_custom_call.1} parent=39 // pred_check_branch
          %238 = sbr.rel (%p236) target = $region44
        $region43: #{tpu_custom_call.1} parent=39 // pred_region
          %239 = dma.done %s232, 1536
        $region44: #{tpu_custom_call.1} parent=39 // pred_fallthru
          _
        %s240 = sand.u32 %s44, 1
        %s241 = scalar_lea.sflag [#allocation3], %s240
        %s242 = sand.u32 %s44, 1
        %s243 = smul.addr %s242, 96
        %s244 = scalar_lea.vmem [#allocation2], %s243
        %p245 = pneg %p57
        %p246 = pneg %p54
        %p247 = pneg %p78
        %p248 = pneg %p75
        %p249 = pneg %p99
        %p250 = pneg %p96
        %p251 = pneg %p120
        %p252 = pneg %p117
        %p253 = pneg %p141
        %p254 = pneg %p138
        %p255 = pneg %p169
        %p256 = pneg %p166
        %s257 = sand.u32 %s156, 1
        %s258 = scalar_lea.sflag [#allocation4], %s257
        %s259 = sand.u32 %s156, 1
        %s260 = smul.addr %s259, 96
        %s261 = scalar_lea.vmem [#allocation5], %s260
        %s262 = smul.u32 2, %s26
        %s263 = smul.u32 2, %s27
        %s264 = smul.u32 2, %s26
        %s265 = smul.u32 2, %s27
        %v266 = vld [vmem:[%s1] sm:$0xff]
        %v267 = vld [vmem:[%s1 + $0x8] sm:$0xff]
        %v268 = vld [vmem:[%s1 + $0x10] sm:$0xff]
        %v269 = vld [vmem:[%s1 + $0x18] sm:$0xff]
        %v270 = vld [vmem:[%s1 + $0x20] sm:$0xff]
        %v271 = vld [vmem:[%s1 + $0x28] sm:$0xff]
        %v272 = vld [vmem:[%s2] sm:$0xff]
        %v273 = vld [vmem:[%s2 + $0x8] sm:$0xff]
        %v274 = vld [vmem:[%s2 + $0x10] sm:$0xff]
        %v275 = vld [vmem:[%s2 + $0x18] sm:$0xff]
        %v276 = vld [vmem:[%s2 + $0x20] sm:$0xff]
        %v277 = vld [vmem:[%s2 + $0x28] sm:$0xff]
        %v278 = vld [vmem:[%s3] sm:$0xff]
        %v279 = vld [vmem:[%s3 + $0x8] sm:$0xff]
        %v280 = vld [vmem:[%s3 + $0x10] sm:$0xff]
        %v281 = vld [vmem:[%s4] sm:$0xff]
        %v282 = vld [vmem:[%s4 + $0x8] sm:$0xff]
        %v283 = vld [vmem:[%s4 + $0x10] sm:$0xff]
        %v284 = vld [vmem:[%s235] sm:$0xff]
        %v285 = vld [vmem:[%s235 + $0x8] sm:$0xff]
        %v286 = vld [vmem:[%s235 + $0x10] sm:$0xff]
        %v287 = vld [vmem:[%s235 + $0x18] sm:$0xff]
        %v288 = vld [vmem:[%s235 + $0x20] sm:$0xff]
        %v289 = vld [vmem:[%s235 + $0x28] sm:$0xff]
        %v290 = vadd.f32 %v284, %v286
        %v291 = vadd.f32 %v290, %v288
        %v292 = vrot.slane %v291, 4
        %v293 = vadd.f32 %v291, %v292
        %v294 = vrot.slane %v293, 2
        %v295 = vadd.f32 %v293, %v294
        %v296 = vrot.slane %v295, 1
        %v297 = vadd.f32 %v295, %v296
        %v298 = vadd.f32 %v285, %v287
        %v299 = vadd.f32 %v298, %v289
        %v300 = vrot.slane %v299, 4
        %v301 = vadd.f32 %v299, %v300
        %v302 = vrot.slane %v301, 2
        %v303 = vadd.f32 %v301, %v302
        %v304 = vrot.slane %v303, 1
        %v305 = vadd.f32 %v303, %v304
        %v306 = vrcp.pop 24.0
        %v307 = vmul.f32 %v297, %v306
        %v308 = vmul.f32 %v305, %v306
        %v309 = vmul.f32 %v284, %v284
        %v310 = vmul.f32 %v285, %v285
        %v311 = vmul.f32 %v286, %v286
        %v312 = vmul.f32 %v287, %v287
        %v313 = vmul.f32 %v288, %v288
        %v314 = vmul.f32 %v289, %v289
        %v315 = vadd.f32 %v309, %v311
        %v316 = vadd.f32 %v315, %v313
        %v317 = vrot.slane %v316, 4
        %v318 = vadd.f32 %v316, %v317
        %v319 = vrot.slane %v318, 2
        %v320 = vadd.f32 %v318, %v319
        %v321 = vrot.slane %v320, 1
        %v322 = vadd.f32 %v320, %v321
        %v323 = vadd.f32 %v310, %v312
        %v324 = vadd.f32 %v323, %v314
        %v325 = vrot.slane %v324, 4
        %v326 = vadd.f32 %v324, %v325
        %v327 = vrot.slane %v326, 2
        %v328 = vadd.f32 %v326, %v327
        %v329 = vrot.slane %v328, 1
        %v330 = vadd.f32 %v328, %v329
        %v331 = vmul.f32 %v322, %v306
        %v332 = vmul.f32 %v330, %v306
        %v333 = vmul.f32 %v307, %v307
        %v334 = vmul.f32 %v308, %v308
        %v335 = vsub.f32 %v331, %v333
        %v336 = vsub.f32 %v332, %v334
        %v337 = vsub.f32 %v284, %v307
        %v338 = vsub.f32 %v285, %v308
        %v339 = vsub.f32 %v286, %v307
        %v340 = vsub.f32 %v287, %v308
        %v341 = vsub.f32 %v288, %v307
        %v342 = vsub.f32 %v289, %v308
        %v343 = vadd.f32 %v335, 1e-05
        %v344 = vadd.f32 %v336, 1e-05
        %v345 = vrsqrt.pop %v343
        %v346 = vrsqrt.pop %v344
        %v347 = vmul.f32 %v337, %v345
        %v348 = vmul.f32 %v338, %v346
        %v349 = vmul.f32 %v339, %v345
        %v350 = vmul.f32 %v340, %v346
        %v351 = vmul.f32 %v341, %v345
        %v352 = vmul.f32 %v342, %v346
        %354 = vset.pattern.permute.xlu0 0
        %355 = vperm.xlu0 %354, %v272
        %v356 = vpop.permute.xlu0 %355
        %359 = vset.pattern.permute.xlu0 0
        %360 = vperm.xlu0 %359, %v273
        %v361 = vpop.permute.xlu0 %360
        %364 = vset.pattern.permute.xlu0 0
        %365 = vperm.xlu0 %364, %v274
        %v366 = vpop.permute.xlu0 %365
        %369 = vset.pattern.permute.xlu0 0
        %370 = vperm.xlu0 %369, %v275
        %v371 = vpop.permute.xlu0 %370
        %374 = vset.pattern.permute.xlu0 0
        %375 = vperm.xlu0 %374, %v276
        %v376 = vpop.permute.xlu0 %375
        %379 = vset.pattern.permute.xlu0 0
        %380 = vperm.xlu0 %379, %v277
        %v381 = vpop.permute.xlu0 %380
        %vm383 = vcmask 195584
        %v385 = vsel %vm383, %v266, 0
        %v388 = vsel %vm383, %v267, 0
        %v391 = vsel %vm383, %v268, 0
        %v394 = vsel %vm383, %v269, 0
        %v397 = vsel %vm383, %v270, 0
        %v400 = vsel %vm383, %v271, 0
        %402 = vmatprep.subr.mxu0 0.0
        %403 = vmatpush1.msra.mxu0 0.0
        %404 = vmatprep.subr.mxu0 0.0
        %405 = vmatpush1.msra.mxu0 0.0
        %406 = vmatprep.subr.mxu0 0.0
        %407 = vmatpush1.msra.mxu0 0.0
        %408 = vmatprep.subr.mxu0 0.0
        %409 = vmatpush1.msra.mxu0 0.0
        %410 = vmatprep.subr.mxu0 0.0
        %411 = vmatpush1.msra.mxu0 0.0
        %412 = vmatprep.subr.mxu0 0.0
        %413 = vmatpush1.msra.mxu0 0.0
        %414 = vmatprep.subr.mxu0 0.0
        %415 = vmatpush1.msra.mxu0 0.0
        %416 = vmatprep.subr.mxu0 0.0
        %417 = vmatpush1.msra.mxu0 0.0
        %418 = vmatprep.subr.mxu0 0.0
        %419 = vmatpush1.msra.mxu0 0.0
        %420 = vmatprep.subr.mxu0 0.0
        %421 = vmatpush1.msra.mxu0 0.0
        %422 = vmatprep.subr.mxu0 0.0
        %423 = vmatpush1.msra.mxu0 0.0
        %424 = vmatprep.subr.mxu0 0.0
        %425 = vmatpush1.msra.mxu0 0.0
        %426 = vmatprep.subr.mxu0 0.0
        %427 = vmatpush1.msra.mxu0 0.0
        %428 = vmatprep.subr.mxu0 %v352
        %429 = vmatpush1.msra.mxu0 %v351
        %430 = vmatprep.subr.mxu0 %v350
        %431 = vmatpush1.msra.mxu0 %v349
        %432 = vmatprep.subr.mxu0 %v348
        %433 = vmatpush1.msra.mxu0 %v347
        %434 = vmatprep.subr.mxu0 0.0
        %435 = vmatpush2.msra.mxu0 0.0
        %436 = vmatprep.subr.mxu0 0.0
        %437 = vmatpush2.msra.mxu0 0.0
        %438 = vmatprep.subr.mxu0 0.0
        %439 = vmatpush2.msra.mxu0 0.0
        %440 = vmatprep.subr.mxu0 0.0
        %441 = vmatpush2.msra.mxu0 0.0
        %442 = vmatprep.subr.mxu0 0.0
        %443 = vmatpush2.msra.mxu0 0.0
        %444 = vmatprep.subr.mxu0 0.0
        %445 = vmatpush2.msra.mxu0 0.0
        %446 = vmatprep.subr.mxu0 0.0
        %447 = vmatpush2.msra.mxu0 0.0
        %448 = vmatprep.subr.mxu0 0.0
        %449 = vmatpush2.msra.mxu0 0.0
        %450 = vmatprep.subr.mxu0 0.0
        %451 = vmatpush2.msra.mxu0 0.0
        %452 = vmatprep.subr.mxu0 0.0
        %453 = vmatpush2.msra.mxu0 0.0
        %454 = vmatprep.subr.mxu0 0.0
        %455 = vmatpush2.msra.mxu0 0.0
        %456 = vmatprep.subr.mxu0 0.0
        %457 = vmatpush2.msra.mxu0 0.0
        %458 = vmatprep.subr.mxu0 0.0
        %459 = vmatpush2.msra.mxu0 0.0
        %460 = vmatprep.subr.mxu0 0.0
        %461 = vmatpush2.msra.mxu0 0.0
        %462 = vmatprep.subr.mxu0 0.0
        %463 = vmatpush2.msra.mxu0 0.0
        %464 = vmatprep.subr.mxu0 0.0
        %465 = vmatpush2.msra.mxu0 0.0
        %466 = vmatprep.mubr.f32.mxu0 0.0
        %467 = vmatmul.mubr.f32.gmra.mxu0 %v385
        %v468 = vpop.f32.mrf.mxu0
        %v469 = vadd.f32 %v356, %v468
        %v470 = vpop.f32.mrf.mxu0
        %v471 = vadd.f32 %v356, %v470
        %472 = vmatprep.mubr.f32.mxu0 0.0
        %473 = vmatmul.mubr.f32.gmra.mxu0 %v388
        %v474 = vpop.f32.mrf.mxu0
        %v475 = vadd.f32 %v361, %v474
        %v476 = vpop.f32.mrf.mxu0
        %v477 = vadd.f32 %v361, %v476
        %478 = vmatprep.mubr.f32.mxu0 0.0
        %479 = vmatmul.mubr.f32.gmra.mxu0 %v391
        %v480 = vpop.f32.mrf.mxu0
        %v481 = vadd.f32 %v366, %v480
        %v482 = vpop.f32.mrf.mxu0
        %v483 = vadd.f32 %v366, %v482
        %484 = vmatprep.mubr.f32.mxu0 0.0
        %485 = vmatmul.mubr.f32.gmra.mxu0 %v394
        %v486 = vpop.f32.mrf.mxu0
        %v487 = vadd.f32 %v371, %v486
        %v488 = vpop.f32.mrf.mxu0
        %v489 = vadd.f32 %v371, %v488
        %490 = vmatprep.mubr.f32.mxu0 0.0
        %491 = vmatmul.mubr.f32.gmra.mxu0 %v397
        %v492 = vpop.f32.mrf.mxu0
        %v493 = vadd.f32 %v376, %v492
        %v494 = vpop.f32.mrf.mxu0
        %v495 = vadd.f32 %v376, %v494
        %496 = vmatprep.mubr.f32.mxu0 0.0
        %497 = vmatmul.mubr.f32.gmra.mxu0 %v400
        %v498 = vpop.f32.mrf.mxu0
        %v499 = vadd.f32 %v381, %v498
        %v500 = vpop.f32.mrf.mxu0
        %v501 = vadd.f32 %v381, %v500
        %502 = vdwg.mxu0
        %v503 = vmul.f32 %v469, 0.5
        %v504 = vmul.f32 %v471, 0.5
        %v505 = vmul.f32 %v475, 0.5
        %v506 = vmul.f32 %v477, 0.5
        %v507 = vmul.f32 %v481, 0.5
        %v508 = vmul.f32 %v483, 0.5
        %v509 = vmul.f32 %v487, 0.5
        %v510 = vmul.f32 %v489, 0.5
        %v511 = vmul.f32 %v493, 0.5
        %v512 = vmul.f32 %v495, 0.5
        %v513 = vmul.f32 %v499, 0.5
        %v514 = vmul.f32 %v501, 0.5
        %v515 = vmul.f32 %v469, 0.70710677
        %v516 = vmul.f32 %v471, 0.70710677
        %v517 = vmul.f32 %v475, 0.70710677
        %v518 = vmul.f32 %v477, 0.70710677
        %v519 = vmul.f32 %v481, 0.70710677
        %v520 = vmul.f32 %v483, 0.70710677
        %v521 = vmul.f32 %v487, 0.70710677
        %v522 = vmul.f32 %v489, 0.70710677
        %v523 = vmul.f32 %v493, 0.70710677
        %v524 = vmul.f32 %v495, 0.70710677
        %v525 = vmul.f32 %v499, 0.70710677
        %v526 = vmul.f32 %v501, 0.70710677
        %v527 = verf.f32.pop %v515
        %v528 = verf.f32.pop %v516
        %v529 = verf.f32.pop %v517
        %v530 = verf.f32.pop %v518
        %v531 = verf.f32.pop %v519
        %v532 = verf.f32.pop %v520
        %v533 = verf.f32.pop %v521
        %v534 = verf.f32.pop %v522
        %v535 = verf.f32.pop %v523
        %v536 = verf.f32.pop %v524
        %v537 = verf.f32.pop %v525
        %v538 = verf.f32.pop %v526
        %v539 = vadd.f32 %v527, 1.0
        %v540 = vadd.f32 %v528, 1.0
        %v541 = vadd.f32 %v529, 1.0
        %v542 = vadd.f32 %v530, 1.0
        %v543 = vadd.f32 %v531, 1.0
        %v544 = vadd.f32 %v532, 1.0
        %v545 = vadd.f32 %v533, 1.0
        %v546 = vadd.f32 %v534, 1.0
        %v547 = vadd.f32 %v535, 1.0
        %v548 = vadd.f32 %v536, 1.0
        %v549 = vadd.f32 %v537, 1.0
        %v550 = vadd.f32 %v538, 1.0
        %v551 = vmul.f32 %v503, %v539
        %v552 = vmul.f32 %v504, %v540
        %v553 = vmul.f32 %v505, %v541
        %v554 = vmul.f32 %v506, %v542
        %v555 = vmul.f32 %v507, %v543
        %v556 = vmul.f32 %v508, %v544
        %v557 = vmul.f32 %v509, %v545
        %v558 = vmul.f32 %v510, %v546
        %v559 = vmul.f32 %v511, %v547
        %v560 = vmul.f32 %v512, %v548
        %v561 = vmul.f32 %v513, %v549
        %v562 = vmul.f32 %v514, %v550
        %564 = vset.pattern.permute.xlu0 0
        %565 = vperm.xlu0 %564, %v281
        %v566 = vpop.permute.xlu0 %565
        %569 = vset.pattern.permute.xlu0 0
        %570 = vperm.xlu0 %569, %v282
        %v571 = vpop.permute.xlu0 %570
        %574 = vset.pattern.permute.xlu0 0
        %575 = vperm.xlu0 %574, %v283
        %v576 = vpop.permute.xlu0 %575
        %vm578 = vcmask 392192
        %v580 = vsel %vm578, %v278, 0
        %v583 = vsel %vm578, %v279, 0
        %v586 = vsel %vm578, %v280, 0
        %588 = vmatprep.subr.mxu0 0.0
        %589 = vmatpush1.msra.mxu0 0.0
        %590 = vmatprep.subr.mxu0 0.0
        %591 = vmatpush1.msra.mxu0 0.0
        %592 = vmatprep.subr.mxu0 0.0
        %593 = vmatpush1.msra.mxu0 0.0
        %594 = vmatprep.subr.mxu0 0.0
        %595 = vmatpush1.msra.mxu0 0.0
        %596 = vmatprep.subr.mxu0 0.0
        %597 = vmatpush1.msra.mxu0 0.0
        %598 = vmatprep.subr.mxu0 0.0
        %599 = vmatpush1.msra.mxu0 0.0
        %600 = vmatprep.subr.mxu0 0.0
        %601 = vmatpush1.msra.mxu0 0.0
        %602 = vmatprep.subr.mxu0 0.0
        %603 = vmatpush1.msra.mxu0 0.0
        %604 = vmatprep.subr.mxu0 0.0
        %605 = vmatpush1.msra.mxu0 0.0
        %606 = vmatprep.subr.mxu0 0.0
        %607 = vmatpush1.msra.mxu0 0.0
        %608 = vmatprep.subr.mxu0 %v562
        %609 = vmatpush1.msra.mxu0 %v561
        %610 = vmatprep.subr.mxu0 %v560
        %611 = vmatpush1.msra.mxu0 %v559
        %612 = vmatprep.subr.mxu0 %v558
        %613 = vmatpush1.msra.mxu0 %v557
        %614 = vmatprep.subr.mxu0 %v556
        %615 = vmatpush1.msra.mxu0 %v555
        %616 = vmatprep.subr.mxu0 %v554
        %617 = vmatpush1.msra.mxu0 %v553
        %618 = vmatprep.subr.mxu0 %v552
        %619 = vmatpush1.msra.mxu0 %v551
        %620 = vmatprep.subr.mxu0 0.0
        %621 = vmatpush2.msra.mxu0 0.0
        %622 = vmatprep.subr.mxu0 0.0
        %623 = vmatpush2.msra.mxu0 0.0
        %624 = vmatprep.subr.mxu0 0.0
        %625 = vmatpush2.msra.mxu0 0.0
        %626 = vmatprep.subr.mxu0 0.0
        %627 = vmatpush2.msra.mxu0 0.0
        %628 = vmatprep.subr.mxu0 0.0
        %629 = vmatpush2.msra.mxu0 0.0
        %630 = vmatprep.subr.mxu0 0.0
        %631 = vmatpush2.msra.mxu0 0.0
        %632 = vmatprep.subr.mxu0 0.0
        %633 = vmatpush2.msra.mxu0 0.0
        %634 = vmatprep.subr.mxu0 0.0
        %635 = vmatpush2.msra.mxu0 0.0
        %636 = vmatprep.subr.mxu0 0.0
        %637 = vmatpush2.msra.mxu0 0.0
        %638 = vmatprep.subr.mxu0 0.0
        %639 = vmatpush2.msra.mxu0 0.0
        %640 = vmatprep.subr.mxu0 0.0
        %641 = vmatpush2.msra.mxu0 0.0
        %642 = vmatprep.subr.mxu0 0.0
        %643 = vmatpush2.msra.mxu0 0.0
        %644 = vmatprep.subr.mxu0 0.0
        %645 = vmatpush2.msra.mxu0 0.0
        %646 = vmatprep.subr.mxu0 0.0
        %647 = vmatpush2.msra.mxu0 0.0
        %648 = vmatprep.subr.mxu0 0.0
        %649 = vmatpush2.msra.mxu0 0.0
        %650 = vmatprep.subr.mxu0 0.0
        %651 = vmatpush2.msra.mxu0 0.0
        %652 = vmatprep.mubr.f32.mxu0 0.0
        %653 = vmatmul.mubr.f32.gmra.mxu0 %v580
        %v654 = vpop.f32.mrf.mxu0
        %v655 = vadd.f32 %v566, %v654
        %v656 = vpop.f32.mrf.mxu0
        %v657 = vadd.f32 %v566, %v656
        %658 = vmatprep.mubr.f32.mxu0 0.0
        %659 = vmatmul.mubr.f32.gmra.mxu0 %v583
        %v660 = vpop.f32.mrf.mxu0
        %v661 = vadd.f32 %v571, %v660
        %v662 = vpop.f32.mrf.mxu0
        %v663 = vadd.f32 %v571, %v662
        %664 = vmatprep.mubr.f32.mxu0 0.0
        %665 = vmatmul.mubr.f32.gmra.mxu0 %v586
        %v666 = vpop.f32.mrf.mxu0
        %v667 = vadd.f32 %v576, %v666
        %v668 = vpop.f32.mrf.mxu0
        %v669 = vadd.f32 %v576, %v668
        %670 = vdwg.mxu0
        %671 = vst [vmem:[%s261] sm:$0xff] %v655
        %672 = vst [vmem:[%s261 + $0x8] sm:$0xff] %v657
        %673 = vst [vmem:[%s261 + $0x10] sm:$0xff] %v661
        %674 = vst [vmem:[%s261 + $0x18] sm:$0xff] %v663
        %675 = vst [vmem:[%s261 + $0x20] sm:$0xff] %v667
        %676 = vst [vmem:[%s261 + $0x28] sm:$0xff] %v669
        %s677 = scalar_lea.vmem %s235, 48 [#allocation2]
        %v678 = vld [vmem:[%s677] sm:$0xff]
        %v679 = vld [vmem:[%s677 + $0x8] sm:$0xff]
        %v680 = vld [vmem:[%s677 + $0x10] sm:$0xff]
        %v681 = vld [vmem:[%s677 + $0x18] sm:$0xff]
        %v682 = vld [vmem:[%s677 + $0x20] sm:$0xff]
        %v683 = vld [vmem:[%s677 + $0x28] sm:$0xff]
        %v684 = vadd.f32 %v678, %v680
        %v685 = vadd.f32 %v684, %v682
        %v686 = vrot.slane %v685, 4
        %v687 = vadd.f32 %v685, %v686
        %v688 = vrot.slane %v687, 2
        %v689 = vadd.f32 %v687, %v688
        %v690 = vrot.slane %v689, 1
        %v691 = vadd.f32 %v689, %v690
        %v692 = vadd.f32 %v679, %v681
        %v693 = vadd.f32 %v692, %v683
        %v694 = vrot.slane %v693, 4
        %v695 = vadd.f32 %v693, %v694
        %v696 = vrot.slane %v695, 2
        %v697 = vadd.f32 %v695, %v696
        %v698 = vrot.slane %v697, 1
        %v699 = vadd.f32 %v697, %v698
        %v700 = vmul.f32 %v691, %v306
        %v701 = vmul.f32 %v699, %v306
        %v702 = vmul.f32 %v678, %v678
        %v703 = vmul.f32 %v679, %v679
        %v704 = vmul.f32 %v680, %v680
        %v705 = vmul.f32 %v681, %v681
        %v706 = vmul.f32 %v682, %v682
        %v707 = vmul.f32 %v683, %v683
        %v708 = vadd.f32 %v702, %v704
        %v709 = vadd.f32 %v708, %v706
        %v710 = vrot.slane %v709, 4
        %v711 = vadd.f32 %v709, %v710
        %v712 = vrot.slane %v711, 2
        %v713 = vadd.f32 %v711, %v712
        %v714 = vrot.slane %v713, 1
        %v715 = vadd.f32 %v713, %v714
        %v716 = vadd.f32 %v703, %v705
        %v717 = vadd.f32 %v716, %v707
        %v718 = vrot.slane %v717, 4
        %v719 = vadd.f32 %v717, %v718
        %v720 = vrot.slane %v719, 2
        %v721 = vadd.f32 %v719, %v720
        %v722 = vrot.slane %v721, 1
        %v723 = vadd.f32 %v721, %v722
        %v724 = vmul.f32 %v715, %v306
        %v725 = vmul.f32 %v723, %v306
        %v726 = vmul.f32 %v700, %v700
        %v727 = vmul.f32 %v701, %v701
        %v728 = vsub.f32 %v724, %v726
        %v729 = vsub.f32 %v725, %v727
        %v730 = vsub.f32 %v678, %v700
        %v731 = vsub.f32 %v679, %v701
        %v732 = vsub.f32 %v680, %v700
        %v733 = vsub.f32 %v681, %v701
        %v734 = vsub.f32 %v682, %v700
        %v735 = vsub.f32 %v683, %v701
        %v736 = vadd.f32 %v728, 1e-05
        %v737 = vadd.f32 %v729, 1e-05
        %v738 = vrsqrt.pop %v736
        %v739 = vrsqrt.pop %v737
        %v740 = vmul.f32 %v730, %v738
        %v741 = vmul.f32 %v731, %v739
        %v742 = vmul.f32 %v732, %v738
        %v743 = vmul.f32 %v733, %v739
        %v744 = vmul.f32 %v734, %v738
        %v745 = vmul.f32 %v735, %v739
        %746 = vmatprep.subr.mxu0 0.0
        %747 = vmatpush1.msra.mxu0 0.0
        %748 = vmatprep.subr.mxu0 0.0
        %749 = vmatpush1.msra.mxu0 0.0
        %750 = vmatprep.subr.mxu0 0.0
        %751 = vmatpush1.msra.mxu0 0.0
        %752 = vmatprep.subr.mxu0 0.0
        %753 = vmatpush1.msra.mxu0 0.0
        %754 = vmatprep.subr.mxu0 0.0
        %755 = vmatpush1.msra.mxu0 0.0
        %756 = vmatprep.subr.mxu0 0.0
        %757 = vmatpush1.msra.mxu0 0.0
        %758 = vmatprep.subr.mxu0 0.0
        %759 = vmatpush1.msra.mxu0 0.0
        %760 = vmatprep.subr.mxu0 0.0
        %761 = vmatpush1.msra.mxu0 0.0
        %762 = vmatprep.subr.mxu0 0.0
        %763 = vmatpush1.msra.mxu0 0.0
        %764 = vmatprep.subr.mxu0 0.0
        %765 = vmatpush1.msra.mxu0 0.0
        %766 = vmatprep.subr.mxu0 0.0
        %767 = vmatpush1.msra.mxu0 0.0
        %768 = vmatprep.subr.mxu0 0.0
        %769 = vmatpush1.msra.mxu0 0.0
        %770 = vmatprep.subr.mxu0 0.0
        %771 = vmatpush1.msra.mxu0 0.0
        %772 = vmatprep.subr.mxu0 %v745
        %773 = vmatpush1.msra.mxu0 %v744
        %774 = vmatprep.subr.mxu0 %v743
        %775 = vmatpush1.msra.mxu0 %v742
        %776 = vmatprep.subr.mxu0 %v741
        %777 = vmatpush1.msra.mxu0 %v740
        %778 = vmatprep.subr.mxu0 0.0
        %779 = vmatpush2.msra.mxu0 0.0
        %780 = vmatprep.subr.mxu0 0.0
        %781 = vmatpush2.msra.mxu0 0.0
        %782 = vmatprep.subr.mxu0 0.0
        %783 = vmatpush2.msra.mxu0 0.0
        %784 = vmatprep.subr.mxu0 0.0
        %785 = vmatpush2.msra.mxu0 0.0
        %786 = vmatprep.subr.mxu0 0.0
        %787 = vmatpush2.msra.mxu0 0.0
        %788 = vmatprep.subr.mxu0 0.0
        %789 = vmatpush2.msra.mxu0 0.0
        %790 = vmatprep.subr.mxu0 0.0
        %791 = vmatpush2.msra.mxu0 0.0
        %792 = vmatprep.subr.mxu0 0.0
        %793 = vmatpush2.msra.mxu0 0.0
        %794 = vmatprep.subr.mxu0 0.0
        %795 = vmatpush2.msra.mxu0 0.0
        %796 = vmatprep.subr.mxu0 0.0
        %797 = vmatpush2.msra.mxu0 0.0
        %798 = vmatprep.subr.mxu0 0.0
        %799 = vmatpush2.msra.mxu0 0.0
        %800 = vmatprep.subr.mxu0 0.0
        %801 = vmatpush2.msra.mxu0 0.0
        %802 = vmatprep.subr.mxu0 0.0
        %803 = vmatpush2.msra.mxu0 0.0
        %804 = vmatprep.subr.mxu0 0.0
        %805 = vmatpush2.msra.mxu0 0.0
        %806 = vmatprep.subr.mxu0 0.0
        %807 = vmatpush2.msra.mxu0 0.0
        %808 = vmatprep.subr.mxu0 0.0
        %809 = vmatpush2.msra.mxu0 0.0
        %810 = vmatprep.mubr.f32.mxu0 0.0
        %811 = vmatmul.mubr.f32.gmra.mxu0 %v385
        %v812 = vpop.f32.mrf.mxu0
        %v813 = vadd.f32 %v356, %v812
        %v814 = vpop.f32.mrf.mxu0
        %v815 = vadd.f32 %v356, %v814
        %816 = vmatprep.mubr.f32.mxu0 0.0
        %817 = vmatmul.mubr.f32.gmra.mxu0 %v388
        %v818 = vpop.f32.mrf.mxu0
        %v819 = vadd.f32 %v361, %v818
        %v820 = vpop.f32.mrf.mxu0
        %v821 = vadd.f32 %v361, %v820
        %822 = vmatprep.mubr.f32.mxu0 0.0
        %823 = vmatmul.mubr.f32.gmra.mxu0 %v391
        %v824 = vpop.f32.mrf.mxu0
        %v825 = vadd.f32 %v366, %v824
        %v826 = vpop.f32.mrf.mxu0
        %v827 = vadd.f32 %v366, %v826
        %828 = vmatprep.mubr.f32.mxu0 0.0
        %829 = vmatmul.mubr.f32.gmra.mxu0 %v394
        %v830 = vpop.f32.mrf.mxu0
        %v831 = vadd.f32 %v371, %v830
        %v832 = vpop.f32.mrf.mxu0
        %v833 = vadd.f32 %v371, %v832
        %834 = vmatprep.mubr.f32.mxu0 0.0
        %835 = vmatmul.mubr.f32.gmra.mxu0 %v397
        %v836 = vpop.f32.mrf.mxu0
        %v837 = vadd.f32 %v376, %v836
        %v838 = vpop.f32.mrf.mxu0
        %v839 = vadd.f32 %v376, %v838
        %840 = vmatprep.mubr.f32.mxu0 0.0
        %841 = vmatmul.mubr.f32.gmra.mxu0 %v400
        %v842 = vpop.f32.mrf.mxu0
        %v843 = vadd.f32 %v381, %v842
        %v844 = vpop.f32.mrf.mxu0
        %v845 = vadd.f32 %v381, %v844
        %846 = vdwg.mxu0
        %v847 = vmul.f32 %v813, 0.5
        %v848 = vmul.f32 %v815, 0.5
        %v849 = vmul.f32 %v819, 0.5
        %v850 = vmul.f32 %v821, 0.5
        %v851 = vmul.f32 %v825, 0.5
        %v852 = vmul.f32 %v827, 0.5
        %v853 = vmul.f32 %v831, 0.5
        %v854 = vmul.f32 %v833, 0.5
        %v855 = vmul.f32 %v837, 0.5
        %v856 = vmul.f32 %v839, 0.5
        %v857 = vmul.f32 %v843, 0.5
        %v858 = vmul.f32 %v845, 0.5
        %v859 = vmul.f32 %v813, 0.70710677
        %v860 = vmul.f32 %v815, 0.70710677
        %v861 = vmul.f32 %v819, 0.70710677
        %v862 = vmul.f32 %v821, 0.70710677
        %v863 = vmul.f32 %v825, 0.70710677
        %v864 = vmul.f32 %v827, 0.70710677
        %v865 = vmul.f32 %v831, 0.70710677
        %v866 = vmul.f32 %v833, 0.70710677
        %v867 = vmul.f32 %v837, 0.70710677
        %v868 = vmul.f32 %v839, 0.70710677
        %v869 = vmul.f32 %v843, 0.70710677
        %v870 = vmul.f32 %v845, 0.70710677
        %v871 = verf.f32.pop %v859
        %v872 = verf.f32.pop %v860
        %v873 = verf.f32.pop %v861
        %v874 = verf.f32.pop %v862
        %v875 = verf.f32.pop %v863
        %v876 = verf.f32.pop %v864
        %v877 = verf.f32.pop %v865
        %v878 = verf.f32.pop %v866
        %v879 = verf.f32.pop %v867
        %v880 = verf.f32.pop %v868
        %v881 = verf.f32.pop %v869
        %v882 = verf.f32.pop %v870
        %v883 = vadd.f32 %v871, 1.0
        %v884 = vadd.f32 %v872, 1.0
        %v885 = vadd.f32 %v873, 1.0
        %v886 = vadd.f32 %v874, 1.0
        %v887 = vadd.f32 %v875, 1.0
        %v888 = vadd.f32 %v876, 1.0
        %v889 = vadd.f32 %v877, 1.0
        %v890 = vadd.f32 %v878, 1.0
        %v891 = vadd.f32 %v879, 1.0
        %v892 = vadd.f32 %v880, 1.0
        %v893 = vadd.f32 %v881, 1.0
        %v894 = vadd.f32 %v882, 1.0
        %v895 = vmul.f32 %v847, %v883
        %v896 = vmul.f32 %v848, %v884
        %v897 = vmul.f32 %v849, %v885
        %v898 = vmul.f32 %v850, %v886
        %v899 = vmul.f32 %v851, %v887
        %v900 = vmul.f32 %v852, %v888
        %v901 = vmul.f32 %v853, %v889
        %v902 = vmul.f32 %v854, %v890
        %v903 = vmul.f32 %v855, %v891
        %v904 = vmul.f32 %v856, %v892
        %v905 = vmul.f32 %v857, %v893
        %v906 = vmul.f32 %v858, %v894
        %907 = vmatprep.subr.mxu0 0.0
        %908 = vmatpush1.msra.mxu0 0.0
        %909 = vmatprep.subr.mxu0 0.0
        %910 = vmatpush1.msra.mxu0 0.0
        %911 = vmatprep.subr.mxu0 0.0
        %912 = vmatpush1.msra.mxu0 0.0
        %913 = vmatprep.subr.mxu0 0.0
        %914 = vmatpush1.msra.mxu0 0.0
        %915 = vmatprep.subr.mxu0 0.0
        %916 = vmatpush1.msra.mxu0 0.0
        %917 = vmatprep.subr.mxu0 0.0
        %918 = vmatpush1.msra.mxu0 0.0
        %919 = vmatprep.subr.mxu0 0.0
        %920 = vmatpush1.msra.mxu0 0.0
        %921 = vmatprep.subr.mxu0 0.0
        %922 = vmatpush1.msra.mxu0 0.0
        %923 = vmatprep.subr.mxu0 0.0
        %924 = vmatpush1.msra.mxu0 0.0
        %925 = vmatprep.subr.mxu0 0.0
        %926 = vmatpush1.msra.mxu0 0.0
        %927 = vmatprep.subr.mxu0 %v906
        %928 = vmatpush1.msra.mxu0 %v905
        %929 = vmatprep.subr.mxu0 %v904
        %930 = vmatpush1.msra.mxu0 %v903
        %931 = vmatprep.subr.mxu0 %v902
        %932 = vmatpush1.msra.mxu0 %v901
        %933 = vmatprep.subr.mxu0 %v900
        %934 = vmatpush1.msra.mxu0 %v899
        %935 = vmatprep.subr.mxu0 %v898
        %936 = vmatpush1.msra.mxu0 %v897
        %937 = vmatprep.subr.mxu0 %v896
        %938 = vmatpush1.msra.mxu0 %v895
        %939 = vmatprep.subr.mxu0 0.0
        %940 = vmatpush2.msra.mxu0 0.0
        %941 = vmatprep.subr.mxu0 0.0
        %942 = vmatpush2.msra.mxu0 0.0
        %943 = vmatprep.subr.mxu0 0.0
        %944 = vmatpush2.msra.mxu0 0.0
        %945 = vmatprep.subr.mxu0 0.0
        %946 = vmatpush2.msra.mxu0 0.0
        %947 = vmatprep.subr.mxu0 0.0
        %948 = vmatpush2.msra.mxu0 0.0
        %949 = vmatprep.subr.mxu0 0.0
        %950 = vmatpush2.msra.mxu0 0.0
        %951 = vmatprep.subr.mxu0 0.0
        %952 = vmatpush2.msra.mxu0 0.0
        %953 = vmatprep.subr.mxu0 0.0
        %954 = vmatpush2.msra.mxu0 0.0
        %955 = vmatprep.subr.mxu0 0.0
        %956 = vmatpush2.msra.mxu0 0.0
        %957 = vmatprep.subr.mxu0 0.0
        %958 = vmatpush2.msra.mxu0 0.0
        %959 = vmatprep.subr.mxu0 0.0
        %960 = vmatpush2.msra.mxu0 0.0
        %961 = vmatprep.subr.mxu0 0.0
        %962 = vmatpush2.msra.mxu0 0.0
        %963 = vmatprep.subr.mxu0 0.0
        %964 = vmatpush2.msra.mxu0 0.0
        %965 = vmatprep.subr.mxu0 0.0
        %966 = vmatpush2.msra.mxu0 0.0
        %967 = vmatprep.subr.mxu0 0.0
        %968 = vmatpush2.msra.mxu0 0.0
        %969 = vmatprep.subr.mxu0 0.0
        %970 = vmatpush2.msra.mxu0 0.0
        %971 = vmatprep.mubr.f32.mxu0 0.0
        %972 = vmatmul.mubr.f32.gmra.mxu0 %v580
        %v973 = vpop.f32.mrf.mxu0
        %v974 = vadd.f32 %v566, %v973
        %v975 = vpop.f32.mrf.mxu0
        %v976 = vadd.f32 %v566, %v975
        %977 = vmatprep.mubr.f32.mxu0 0.0
        %978 = vmatmul.mubr.f32.gmra.mxu0 %v583
        %v979 = vpop.f32.mrf.mxu0
        %v980 = vadd.f32 %v571, %v979
        %v981 = vpop.f32.mrf.mxu0
        %v982 = vadd.f32 %v571, %v981
        %983 = vmatprep.mubr.f32.mxu0 0.0
        %984 = vmatmul.mubr.f32.gmra.mxu0 %v586
        %v985 = vpop.f32.mrf.mxu0
        %v986 = vadd.f32 %v576, %v985
        %v987 = vpop.f32.mrf.mxu0
        %v988 = vadd.f32 %v576, %v987
        %989 = vdwg.mxu0
        %s990 = scalar_lea.vmem %s261, 48 [#allocation5]
        %991 = vst [vmem:[%s990] sm:$0xff] %v974
        %992 = vst [vmem:[%s990 + $0x8] sm:$0xff] %v976
        %993 = vst [vmem:[%s990 + $0x10] sm:$0xff] %v980
        %994 = vst [vmem:[%s990 + $0x18] sm:$0xff] %v982
        %995 = vst [vmem:[%s990 + $0x20] sm:$0xff] %v986
        %996 = vst [vmem:[%s990 + $0x28] sm:$0xff] %v988
        %s997 = sand.u32 %s156, 1
        %s998 = scalar_lea.sflag [#allocation4], %s997
        %s999 = sand.u32 %s156, 1
        %s1000 = smul.addr %s999, 96
        %s1001 = scalar_lea.vmem [#allocation5], %s1000
        // Predicated region
        $region45: #{tpu_custom_call.1} parent=39 // pred_check
          %p1002 = pneg %p166
        $region46: #{tpu_custom_call.1} parent=39 // pred_check_branch
          %1004 = sbr.rel (%p1002) target = $region48
        $region47: #{tpu_custom_call.1} parent=39 // pred_region
          %s1005 = smul.u32 2, %s26
          %s1006 = smul.u32 2, %s27
          %s1008 = ssub.s32 1536, 1536
          %1009 = vsyncadd %s998, %s1008
          %s1010 = smul.addr %s1005, 6
          %s1011 = sadd.s32 %s1006, %s1010
          %s1012 = smul.addr %s1011, 128
          %s1013 = scalar_lea.hbm %s5, %s1012
          %s1014 = sshll.u32 %s1001, 4
          %s1015 = int_to_ptr.vmem [resolvable:$true] %s1014
          %1020 = dma.vmem_to_hbm [thread:$0]  %s1015, 1536, %s1013, %s998, 256, 256, 16
        $region48: #{tpu_custom_call.1} parent=39 // pred_fallthru
          _
      $region40: #{tpu_custom_call.1} parent=5 // pred_fallthru
        _
      %p1021 = scmp.le.s32.totalorder 2, %s17
      // Predicated region
      $region49: #{tpu_custom_call.1} parent=5 // pred_check
        %p1022 = pneg %p1021
      $region50: #{tpu_custom_call.1} parent=5 // pred_check_branch
        %1024 = sbr.rel (%p1022) target = $region52
      $region51: #{tpu_custom_call.1} parent=5 // pred_region
        %s1025 = ssub.s32 %s17, 2
        // Predicated region
        $region53: #{tpu_custom_call.1} parent=51 // pred_check
          %p1026 = pneg %p172
        $region54: #{tpu_custom_call.1} parent=51 // pred_check_branch
          %1028 = sbr.rel (%p1026) target = $region56
        $region55: #{tpu_custom_call.1} parent=51 // pred_region
          %s1029 = sand.u32 %s157, 1
          %s1030 = scalar_lea.sflag [#allocation4], %s1029
          %s1031 = sand.u32 %s157, 1
          %s1032 = smul.addr %s1031, 96
          %s1033 = scalar_lea.vmem [#allocation5], %s1032
          %1034 = dma.done %s1030, 1536
        $region56: #{tpu_custom_call.1} parent=51 // pred_fallthru
          _
      $region52: #{tpu_custom_call.1} parent=5 // pred_fallthru
        _
    $region6: #{tpu_custom_call.1} parent=1 // loop_footer
      %s21 = sadd.s32 1, %s17
    $region7: #{tpu_custom_call.1} parent=1 // loop_footer_branch
      %16 = sbr.rel target = $region3
    $region8: #{tpu_custom_call.1} parent=1 // loop_exit
      _
    %1035 = vsyncpa [#allocation3], 1
    %s1036 = scalar_lea.sflag [#allocation3], 1
    %1037 = vsyncpa %s1036, 1
    %1038 = vsyncpa [#allocation4], 1
    %s1039 = scalar_lea.sflag [#allocation4], 1
    %1040 = vsyncpa %s1039, 1

</llo_original>
